<compile_context>
chip_gen: v7x
topology: tpu7x:2x2x1
jax: 0.10.0
libtpu: 0.0.40
codegen_flags: <defaults>
</compile_context>

<pallas_src>
import functools

import jax
import jax.numpy as jnp
import numpy as np
from jax import lax
from jax.experimental import pallas as pl
from jax.experimental.pallas import tpu as pltpu


# --------------------------- fused Pallas kernel ----------------------------
def _fused_kernel(x_ref, wb1_ref, b1_ref, wb2_ref, b2_ref, wb3_ref, b3_ref,
                  wb4_ref, b4_ref, o_ref, c1_scr, *, H):
    """One batch-block (B_BLK images, rows stacked) per grid step.

    x_ref   : (B_BLK*H, W*c_in)   lane-dense activation slab (f32)
    wbK_ref : (3*W*Cin_k, W*Cout_k) bf16 banded weights, ky blocks stacked on K;
              horizontal reflection + kx taps already folded in.
    bK_ref  : (1, W*Cout_k)       f32 bias tiled across W
    o_ref   : (B_BLK*H, W*c_in)
    c1_scr  : VMEM (B_BLK*H, W*c_mid) f32 - residual (c1) scratch
    """
    M = x_ref.shape[0]                                   # B_BLK * H
    x = x_ref[...].astype(jnp.float32)

    # Image-local row position (computed once, reused by all four convs).
    row = lax.broadcasted_iota(jnp.int32, (M, 1), 0)
    loc = row % H
    top = loc == 0                                       # image-local row 0
    bot = loc == (H - 1)                                 # image-local row H-1

    def conv(a, w_ref, b_ref, relu=False, res_ref=None):
        # a: (M, K0) f32 activation slab, K0 = W*c.
        # Vertical shifted slabs (row r of up <- a[r-1], dn <- a[r+1]); the
        # wrap rows are fixed up by the reflection masks below, so real rows
        # never read across an image boundary.
        up_g = jnp.concatenate([a[:1], a[:-1]], axis=0)
        dn_g = jnp.concatenate([a[1:], a[-1:]], axis=0)
        up = jnp.where(top, dn_g, up_g)                  # ReflectionPad top
        dn = jnp.where(bot, up_g, dn_g)                  # ReflectionPad bottom
        # im2row LHS: [ky=0 | ky=1 | ky=2] along K; one MXU matmul per conv.
        lhs = jnp.concatenate([up, a, dn], axis=1).astype(jnp.bfloat16)
        acc = jnp.dot(lhs, w_ref[...], preferred_element_type=jnp.float32)
        acc = acc + b_ref[...]                           # f32 epilogue
        if relu:
            acc = jnp.maximum(acc, 0.0)
        if res_ref is not None:
            acc = acc + res_ref[...]
        return acc

    c1_scr[...] = conv(x, wb1_ref, b1_ref)               # conv1 -> VMEM scratch
    r1 = conv(c1_scr[...], wb2_ref, b2_ref, relu=True)   # conv2 + ReLU
    r2 = conv(r1, wb3_ref, b3_ref, res_ref=c1_scr)        # conv3 + residual c1
    out = conv(r2, wb4_ref, b4_ref)                      # conv4
    o_ref[...] = out.astype(o_ref.dtype)


def _pick_batch_block(N, H, target_rows=256):
    """Images per grid step: target M ~ 256 rows, divisor of N; give both v7x
    TensorCores work when that does not drop M below ~128."""
    b = max(1, min(N, target_rows // max(1, H)))
    while N % b:
        b -= 1
    if N // b == 1 and N > 1 and b % 2 == 0 and (b // 2) * H >= 128:
        b //= 2
    return b


def _fused_call(x2, p, *, N, H, W, c_in, c_mid, b_blk):
    """x2: (N*H, W*c_in) lane-dense slab. Returns (N*H, W*c_in)."""
    m_blk = b_blk * H
    k1 = W * c_in
    km = W * c_mid

    def wspec(shape):
        # Grid-invariant blocks: single-buffered (no double-buffer waste).
        return pl.BlockSpec(shape, lambda n: (0, 0),
                            pipeline_mode=pl.Buffered(1))

    in_specs = [
        pl.BlockSpec((m_blk, k1), lambda n: (n, 0)),     # x
        wspec((3 * k1, km)), wspec((1, km)),             # conv1
        wspec((3 * km, km)), wspec((1, km)),             # conv2
        wspec((3 * km, km)), wspec((1, km)),             # conv3
        wspec((3 * km, k1)), wspec((1, k1)),             # conv4
    ]

    kernel = functools.partial(_fused_kernel, H=H)
    return pl.pallas_call(
        kernel,
        out_shape=jax.ShapeDtypeStruct((N * H, k1), x2.dtype),
        grid=(N // b_blk,),
        in_specs=in_specs,
        out_specs=pl.BlockSpec((m_blk, k1), lambda n: (n, 0)),
        scratch_shapes=[pltpu.VMEM((m_blk, km), jnp.float32)],
        compiler_params=pltpu.CompilerParams(
            dimension_semantics=("parallel",)),
    )(x2, p["wb1"], p["b1"], p["wb2"], p["b2"], p["wb3"], p["b3"],
      p["wb4"], p["b4"])


# --------------------------- parameter packing -------------------------------
def init_params(key, in_dim, inter_dim, scale=0.1):
    """Deterministic synthetic weights, HWIO layout, matching module shapes."""
    ks = jax.random.split(key, 8)

    def w(k, cin, cout):
        return scale * jax.random.normal(k, (3, 3, cin, cout), jnp.float32)

    def b(k, cout):
        return scale * jax.random.normal(k, (cout,), jnp.float32)

    return dict(
        w1=w(ks[0], in_dim, inter_dim),     b1=b(ks[1], inter_dim),
        wr1=w(ks[2], inter_dim, inter_dim), br1=b(ks[3], inter_dim),
        wr2=w(ks[4], inter_dim, inter_dim), br2=b(ks[5], inter_dim),
        w3=w(ks[6], inter_dim, in_dim),     b3=b(ks[7], in_dim),
    )


def pack_params(params, W):
    """One-time repack: HWIO (3,3,Cin,Cout) -> banded (3*W*Cin, W*Cout) bf16,
    with the horizontal reflection + kx taps folded in (the three ky blocks
    stacked along K); bias -> (1, W*Cout) f32 tiled row."""

    def banded(w_hwio):
        w = np.asarray(w_hwio, np.float32)
        cin, cout = w.shape[2], w.shape[3]
        blocks = []
        for ky in range(3):
            B = np.zeros((W * cin, W * cout), np.float32)
            for col in range(W):
                for kx in range(3):
                    src = col + kx - 1
                    if src < 0:
                        src = -src                        # reflect left
                    elif src > W - 1:
                        src = 2 * (W - 1) - src           # reflect right
                    B[src * cin:(src + 1) * cin,
                      col * cout:(col + 1) * cout] += w[ky, kx]
            blocks.append(B)
        return jnp.asarray(np.concatenate(blocks, axis=0), jnp.bfloat16)

    def bias_row(b):
        b = np.asarray(b, np.float32)
        return jnp.asarray(np.tile(b, W)[None, :])

    return dict(
        wb1=banded(params["w1"]),  b1=bias_row(params["b1"]),
        wb2=banded(params["wr1"]), b2=bias_row(params["br1"]),
        wb3=banded(params["wr2"]), b3=bias_row(params["br2"]),
        wb4=banded(params["w3"]),  b4=bias_row(params["b3"]),
    )


# ------------------------------- forward ------------------------------------
@jax.jit
def post_correlation_block(x_nchw, packed):
    N, c_in, H, W = x_nchw.shape
    assert H >= 2 and W >= 2, "ReflectionPad2d(1) requires H >= 2 and W >= 2"
    c_mid = packed["b1"].shape[1] // W
    b_blk = _pick_batch_block(N, H)
    # NCHW -> lane-dense (N*H, W*C) slab (single entry-side layout pass; the
    # final reshape is free, only the transpose moves data).
    x2 = jnp.transpose(x_nchw, (0, 2, 3, 1)).reshape(N * H, W * c_in)
    out2 = _fused_call(x2, packed, N=N, H=H, W=W, c_in=c_in, c_mid=c_mid,
                       b_blk=b_blk)
    return jnp.transpose(out2.reshape(N, H, W, c_in), (0, 3, 1, 2))


# ---------------- pure-JAX reference (for correctness check) ----------------
def _ref_conv(x_nhwc, w, b, relu=False, residual=None):
    x_pad = jnp.pad(x_nhwc, ((0, 0), (1, 1), (1, 1), (0, 0)), mode="reflect")
    y = lax.conv_general_dilated(
        x_pad, w, window_strides=(1, 1), padding="VALID",
        dimension_numbers=("NHWC", "HWIO", "NHWC")) + b
    if relu:
        y = jnp.maximum(y, 0.0)
    if residual is not None:
        y = y + residual
    return y


def _ref_forward(x_nchw, p):
    x = jnp.transpose(x_nchw, (0, 2, 3, 1))
    c1 = _ref_conv(x, p["w1"], p["b1"])
    r1 = _ref_conv(c1, p["wr1"], p["br1"], relu=True)
    r2 = _ref_conv(r1, p["wr2"], p["br2"], residual=c1)
    out = _ref_conv(r2, p["w3"], p["b3"])
    return jnp.transpose(out, (0, 3, 1, 2))


if __name__ == "__main__":
    key = jax.random.PRNGKey(0)
    k_x, k_p = jax.random.split(key)

    batch, in_dim, inter_dim, hw = 2, 4, 8, 16
    x = jax.random.normal(k_x, (batch, in_dim, hw, hw), jnp.float32)  # NCHW
    params = init_params(k_p, in_dim, inter_dim)
    packed = pack_params(params, hw)

    out = post_correlation_block(x, packed)
    out = jax.block_until_ready(out)

    ref = _ref_forward(x, params)
    # bf16 MXU inputs (f32 accumulation) -> tolerance loosened vs the pure-f32
    # variant, per review note.
    np.testing.assert_allclose(np.asarray(out), np.asarray(ref),
                               rtol=2e-2, atol=2e-2)
    assert out.shape == x.shape

    print("KERNEL_OK")
</pallas_src>

<mosaic_0001>
module attributes {stable_mosaic.version = 11 : i64} {
  func.func @_fused_kernel(%arg0: i32, %arg1: memref<32x64xf32, #tpu.memory_space<vmem>>, %arg2: memref<192x128xbf16, #tpu.memory_space<vmem>>, %arg3: memref<1x128xf32, #tpu.memory_space<vmem>>, %arg4: memref<384x128xbf16, #tpu.memory_space<vmem>>, %arg5: memref<1x128xf32, #tpu.memory_space<vmem>>, %arg6: memref<384x128xbf16, #tpu.memory_space<vmem>>, %arg7: memref<1x128xf32, #tpu.memory_space<vmem>>, %arg8: memref<384x64xbf16, #tpu.memory_space<vmem>>, %arg9: memref<1x64xf32, #tpu.memory_space<vmem>>, %arg10: memref<32x64xf32, #tpu.memory_space<vmem>>, %arg11: memref<32x128xf32, #tpu.memory_space<vmem>>) attributes {dimension_semantics = [#tpu.dimension_semantics<parallel>], iteration_bounds = array<i64: 1>, scalar_prefetch = 0 : i64, scratch_operands = 1 : i64, tpu.core_type = #tpu.core_type<tc>, window_params = [{transform_indices = @transform_0, window_bounds = array<i64: 32, 64>}, {pipeline_mode = #tpu.pipeline_mode<synchronous>, transform_indices = @transform_1, window_bounds = array<i64: 192, 128>}, {pipeline_mode = #tpu.pipeline_mode<synchronous>, transform_indices = @transform_2, window_bounds = array<i64: 1, 128>}, {pipeline_mode = #tpu.pipeline_mode<synchronous>, transform_indices = @transform_3, window_bounds = array<i64: 384, 128>}, {pipeline_mode = #tpu.pipeline_mode<synchronous>, transform_indices = @transform_4, window_bounds = array<i64: 1, 128>}, {pipeline_mode = #tpu.pipeline_mode<synchronous>, transform_indices = @transform_5, window_bounds = array<i64: 384, 128>}, {pipeline_mode = #tpu.pipeline_mode<synchronous>, transform_indices = @transform_6, window_bounds = array<i64: 1, 128>}, {pipeline_mode = #tpu.pipeline_mode<synchronous>, transform_indices = @transform_7, window_bounds = array<i64: 384, 64>}, {pipeline_mode = #tpu.pipeline_mode<synchronous>, transform_indices = @transform_8, window_bounds = array<i64: 1, 64>}, {transform_indices = @transform_9, window_bounds = array<i64: 32, 64>}]} {
    %c0 = arith.constant 0 : index
    %c0_0 = arith.constant 0 : index
    %0 = vector.load %arg1[%c0, %c0_0] : memref<32x64xf32, #tpu.memory_space<vmem>>, vector<32x64xf32>
    %1 = tpu.iota {dimensions = array<i32: 0>} : vector<32x1xi32>
    %c16_i32 = arith.constant 16 : i32
    %c0_i32 = arith.constant 0 : i32
    %2 = arith.cmpi eq, %c16_i32, %c0_i32 : i32
    %c1_i32 = arith.constant 1 : i32
    %3 = arith.select %2, %c1_i32, %c16_i32 : i32
    %4 = vector.broadcast %3 : i32 to vector<32x1xi32>
    %5 = arith.remsi %1, %4 : vector<32x1xi32>
    %c0_i32_1 = arith.constant 0 : i32
    %6 = vector.broadcast %c0_i32_1 : i32 to vector<32x1xi32>
    %7 = arith.cmpi ne, %5, %6 : vector<32x1xi32>
    %c0_i32_2 = arith.constant 0 : i32
    %8 = vector.broadcast %c0_i32_2 : i32 to vector<32x1xi32>
    %9 = arith.cmpi slt, %5, %8 : vector<32x1xi32>
    %c0_i32_3 = arith.constant 0 : i32
    %10 = arith.cmpi slt, %3, %c0_i32_3 : i32
    %11 = vector.broadcast %10 : i1 to vector<32x1xi1>
    %12 = vector.broadcast %11 : vector<32x1xi1> to vector<32x1xi1>
    %13 = arith.xori %9, %12 : vector<32x1xi1>
    %14 = arith.andi %13, %7 : vector<32x1xi1>
    %15 = vector.broadcast %3 : i32 to vector<32x1xi32>
    %16 = arith.addi %5, %15 : vector<32x1xi32>
    %17 = arith.select %14, %16, %5 : vector<32x1xi1>, vector<32x1xi32>
    %c0_i32_4 = arith.constant 0 : i32
    %18 = vector.broadcast %c0_i32_4 : i32 to vector<32x1xi32>
    %19 = arith.cmpi eq, %17, %18 : vector<32x1xi32>
    %c15_i32 = arith.constant 15 : i32
    %20 = vector.broadcast %c15_i32 : i32 to vector<32x1xi32>
    %21 = arith.cmpi eq, %17, %20 : vector<32x1xi32>
    %22 = vector.extract_strided_slice %0 {offsets = [0, 0], sizes = [1, 64], strides = [1, 1]} : vector<32x64xf32> to vector<1x64xf32>
    %23 = vector.extract_strided_slice %0 {offsets = [0, 0], sizes = [31, 64], strides = [1, 1]} : vector<32x64xf32> to vector<31x64xf32>
    %24 = tpu.concatenate %22, %23 in 0 : vector<1x64xf32>, vector<31x64xf32> -> vector<32x64xf32>
    %25 = vector.extract_strided_slice %0 {offsets = [1, 0], sizes = [31, 64], strides = [1, 1]} : vector<32x64xf32> to vector<31x64xf32>
    %26 = vector.extract_strided_slice %0 {offsets = [31, 0], sizes = [1, 64], strides = [1, 1]} : vector<32x64xf32> to vector<1x64xf32>
    %27 = tpu.concatenate %25, %26 in 0 : vector<31x64xf32>, vector<1x64xf32> -> vector<32x64xf32>
    %28 = vector.shape_cast %19 : vector<32x1xi1> to vector<32x1xi1>
    %29 = vector.broadcast %28 : vector<32x1xi1> to vector<32x64xi1>
    %30 = arith.select %29, %27, %24 : vector<32x64xi1>, vector<32x64xf32>
    %31 = vector.shape_cast %21 : vector<32x1xi1> to vector<32x1xi1>
    %32 = vector.broadcast %31 : vector<32x1xi1> to vector<32x64xi1>
    %33 = arith.select %32, %24, %27 : vector<32x64xi1>, vector<32x64xf32>
    %34 = tpu.concatenate %30, %0, %33 in 1 : vector<32x64xf32>, vector<32x64xf32>, vector<32x64xf32> -> vector<32x192xf32>
    %35 = arith.truncf %34 : vector<32x192xf32> to vector<32x192xbf16>
    %c0_5 = arith.constant 0 : index
    %c0_6 = arith.constant 0 : index
    %36 = vector.load %arg2[%c0_5, %c0_6] : memref<192x128xbf16, #tpu.memory_space<vmem>>, vector<192x128xbf16>
    %cst = arith.constant dense<0.000000e+00> : vector<32x128xf32>
    %37 = tpu.matmul %35, %36, %cst {dimension_numbers = #tpu.dot_dimension_numbers<[1], [0], [0], [1], [0, 0, 1, 1], [], []>} : vector<32x192xbf16>, vector<192x128xbf16>, vector<32x128xf32> -> vector<32x128xf32>
    %c0_7 = arith.constant 0 : index
    %c0_8 = arith.constant 0 : index
    %38 = vector.load %arg3[%c0_7, %c0_8] : memref<1x128xf32, #tpu.memory_space<vmem>>, vector<1x128xf32>
    %39 = vector.broadcast %38 : vector<1x128xf32> to vector<32x128xf32>
    %40 = arith.addf %37, %39 : vector<32x128xf32>
    %c0_9 = arith.constant 0 : index
    %c0_10 = arith.constant 0 : index
    %41 = vector.load %arg11[%c0_9, %c0_10] : memref<32x128xf32, #tpu.memory_space<vmem>>, vector<32x128xf32>
    tpu.vector_store %arg11[%c0_9, %c0_10], %40 {strides = array<i32>} : memref<32x128xf32, #tpu.memory_space<vmem>>, vector<32x128xf32>,
    %c0_11 = arith.constant 0 : index
    %c0_12 = arith.constant 0 : index
    %42 = vector.load %arg11[%c0_11, %c0_12] : memref<32x128xf32, #tpu.memory_space<vmem>>, vector<32x128xf32>
    %43 = vector.extract_strided_slice %42 {offsets = [0, 0], sizes = [1, 128], strides = [1, 1]} : vector<32x128xf32> to vector<1x128xf32>
    %44 = vector.extract_strided_slice %42 {offsets = [0, 0], sizes = [31, 128], strides = [1, 1]} : vector<32x128xf32> to vector<31x128xf32>
    %45 = tpu.concatenate %43, %44 in 0 : vector<1x128xf32>, vector<31x128xf32> -> vector<32x128xf32>
    %46 = vector.extract_strided_slice %42 {offsets = [1, 0], sizes = [31, 128], strides = [1, 1]} : vector<32x128xf32> to vector<31x128xf32>
    %47 = vector.extract_strided_slice %42 {offsets = [31, 0], sizes = [1, 128], strides = [1, 1]} : vector<32x128xf32> to vector<1x128xf32>
    %48 = tpu.concatenate %46, %47 in 0 : vector<31x128xf32>, vector<1x128xf32> -> vector<32x128xf32>
    %49 = vector.shape_cast %19 : vector<32x1xi1> to vector<32x1xi1>
    %50 = vector.broadcast %49 : vector<32x1xi1> to vector<32x128xi1>
    %51 = arith.select %50, %48, %45 : vector<32x128xi1>, vector<32x128xf32>
    %52 = vector.shape_cast %21 : vector<32x1xi1> to vector<32x1xi1>
    %53 = vector.broadcast %52 : vector<32x1xi1> to vector<32x128xi1>
    %54 = arith.select %53, %45, %48 : vector<32x128xi1>, vector<32x128xf32>
    %55 = tpu.concatenate %51, %42, %54 in 1 : vector<32x128xf32>, vector<32x128xf32>, vector<32x128xf32> -> vector<32x384xf32>
    %56 = arith.truncf %55 : vector<32x384xf32> to vector<32x384xbf16>
    %c0_13 = arith.constant 0 : index
    %c0_14 = arith.constant 0 : index
    %57 = vector.load %arg4[%c0_13, %c0_14] : memref<384x128xbf16, #tpu.memory_space<vmem>>, vector<384x128xbf16>
    %cst_15 = arith.constant dense<0.000000e+00> : vector<32x128xf32>
    %58 = tpu.matmul %56, %57, %cst_15 {dimension_numbers = #tpu.dot_dimension_numbers<[1], [0], [0], [1], [0, 0, 1, 1], [], []>} : vector<32x384xbf16>, vector<384x128xbf16>, vector<32x128xf32> -> vector<32x128xf32>
    %c0_16 = arith.constant 0 : index
    %c0_17 = arith.constant 0 : index
    %59 = vector.load %arg5[%c0_16, %c0_17] : memref<1x128xf32, #tpu.memory_space<vmem>>, vector<1x128xf32>
    %60 = vector.broadcast %59 : vector<1x128xf32> to vector<32x128xf32>
    %61 = arith.addf %58, %60 : vector<32x128xf32>
    %cst_18 = arith.constant 0.000000e+00 : f32
    %62 = vector.broadcast %cst_18 : f32 to vector<32x128xf32>
    %63 = arith.maximumf %61, %62 : vector<32x128xf32>
    %64 = vector.extract_strided_slice %63 {offsets = [0, 0], sizes = [1, 128], strides = [1, 1]} : vector<32x128xf32> to vector<1x128xf32>
    %65 = vector.extract_strided_slice %63 {offsets = [0, 0], sizes = [31, 128], strides = [1, 1]} : vector<32x128xf32> to vector<31x128xf32>
    %66 = tpu.concatenate %64, %65 in 0 : vector<1x128xf32>, vector<31x128xf32> -> vector<32x128xf32>
    %67 = vector.extract_strided_slice %63 {offsets = [1, 0], sizes = [31, 128], strides = [1, 1]} : vector<32x128xf32> to vector<31x128xf32>
    %68 = vector.extract_strided_slice %63 {offsets = [31, 0], sizes = [1, 128], strides = [1, 1]} : vector<32x128xf32> to vector<1x128xf32>
    %69 = tpu.concatenate %67, %68 in 0 : vector<31x128xf32>, vector<1x128xf32> -> vector<32x128xf32>
    %70 = vector.shape_cast %19 : vector<32x1xi1> to vector<32x1xi1>
    %71 = vector.broadcast %70 : vector<32x1xi1> to vector<32x128xi1>
    %72 = arith.select %71, %69, %66 : vector<32x128xi1>, vector<32x128xf32>
    %73 = vector.shape_cast %21 : vector<32x1xi1> to vector<32x1xi1>
    %74 = vector.broadcast %73 : vector<32x1xi1> to vector<32x128xi1>
    %75 = arith.select %74, %66, %69 : vector<32x128xi1>, vector<32x128xf32>
    %76 = tpu.concatenate %72, %63, %75 in 1 : vector<32x128xf32>, vector<32x128xf32>, vector<32x128xf32> -> vector<32x384xf32>
    %77 = arith.truncf %76 : vector<32x384xf32> to vector<32x384xbf16>
    %c0_19 = arith.constant 0 : index
    %c0_20 = arith.constant 0 : index
    %78 = vector.load %arg6[%c0_19, %c0_20] : memref<384x128xbf16, #tpu.memory_space<vmem>>, vector<384x128xbf16>
    %cst_21 = arith.constant dense<0.000000e+00> : vector<32x128xf32>
    %79 = tpu.matmul %77, %78, %cst_21 {dimension_numbers = #tpu.dot_dimension_numbers<[1], [0], [0], [1], [0, 0, 1, 1], [], []>} : vector<32x384xbf16>, vector<384x128xbf16>, vector<32x128xf32> -> vector<32x128xf32>
    %c0_22 = arith.constant 0 : index
    %c0_23 = arith.constant 0 : index
    %80 = vector.load %arg7[%c0_22, %c0_23] : memref<1x128xf32, #tpu.memory_space<vmem>>, vector<1x128xf32>
    %81 = vector.broadcast %80 : vector<1x128xf32> to vector<32x128xf32>
    %82 = arith.addf %79, %81 : vector<32x128xf32>
    %c0_24 = arith.constant 0 : index
    %c0_25 = arith.constant 0 : index
    %83 = vector.load %arg11[%c0_24, %c0_25] : memref<32x128xf32, #tpu.memory_space<vmem>>, vector<32x128xf32>
    %84 = arith.addf %82, %83 : vector<32x128xf32>
    %85 = vector.extract_strided_slice %84 {offsets = [0, 0], sizes = [1, 128], strides = [1, 1]} : vector<32x128xf32> to vector<1x128xf32>
    %86 = vector.extract_strided_slice %84 {offsets = [0, 0], sizes = [31, 128], strides = [1, 1]} : vector<32x128xf32> to vector<31x128xf32>
    %87 = tpu.concatenate %85, %86 in 0 : vector<1x128xf32>, vector<31x128xf32> -> vector<32x128xf32>
    %88 = vector.extract_strided_slice %84 {offsets = [1, 0], sizes = [31, 128], strides = [1, 1]} : vector<32x128xf32> to vector<31x128xf32>
    %89 = vector.extract_strided_slice %84 {offsets = [31, 0], sizes = [1, 128], strides = [1, 1]} : vector<32x128xf32> to vector<1x128xf32>
    %90 = tpu.concatenate %88, %89 in 0 : vector<31x128xf32>, vector<1x128xf32> -> vector<32x128xf32>
    %91 = vector.shape_cast %19 : vector<32x1xi1> to vector<32x1xi1>
    %92 = vector.broadcast %91 : vector<32x1xi1> to vector<32x128xi1>
    %93 = arith.select %92, %90, %87 : vector<32x128xi1>, vector<32x128xf32>
    %94 = vector.shape_cast %21 : vector<32x1xi1> to vector<32x1xi1>
    %95 = vector.broadcast %94 : vector<32x1xi1> to vector<32x128xi1>
    %96 = arith.select %95, %87, %90 : vector<32x128xi1>, vector<32x128xf32>
    %97 = tpu.concatenate %93, %84, %96 in 1 : vector<32x128xf32>, vector<32x128xf32>, vector<32x128xf32> -> vector<32x384xf32>
    %98 = arith.truncf %97 : vector<32x384xf32> to vector<32x384xbf16>
    %c0_26 = arith.constant 0 : index
    %c0_27 = arith.constant 0 : index
    %99 = vector.load %arg8[%c0_26, %c0_27] : memref<384x64xbf16, #tpu.memory_space<vmem>>, vector<384x64xbf16>
    %cst_28 = arith.constant dense<0.000000e+00> : vector<32x64xf32>
    %100 = tpu.matmul %98, %99, %cst_28 {dimension_numbers = #tpu.dot_dimension_numbers<[1], [0], [0], [1], [0, 0, 1, 1], [], []>} : vector<32x384xbf16>, vector<384x64xbf16>, vector<32x64xf32> -> vector<32x64xf32>
    %c0_29 = arith.constant 0 : index
    %c0_30 = arith.constant 0 : index
    %101 = vector.load %arg9[%c0_29, %c0_30] : memref<1x64xf32, #tpu.memory_space<vmem>>, vector<1x64xf32>
    %102 = vector.broadcast %101 : vector<1x64xf32> to vector<32x64xf32>
    %103 = arith.addf %100, %102 : vector<32x64xf32>
    %c0_31 = arith.constant 0 : index
    %c0_32 = arith.constant 0 : index
    %104 = vector.load %arg10[%c0_31, %c0_32] : memref<32x64xf32, #tpu.memory_space<vmem>>, vector<32x64xf32>
    tpu.vector_store %arg10[%c0_31, %c0_32], %103 {strides = array<i32>} : memref<32x64xf32, #tpu.memory_space<vmem>>, vector<32x64xf32>,
    return
  }
  func.func @transform_0(%arg0: i32) -> (i32, i32) {
    %c0_i32 = arith.constant 0 : i32
    %c0_i32_0 = arith.constant 0 : i32
    return %arg0, %c0_i32 : i32, i32
  }
  func.func @transform_1(%arg0: i32) -> (i32, i32) {
    %c0_i32 = arith.constant 0 : i32
    %c0_i32_0 = arith.constant 0 : i32
    %c0_i32_1 = arith.constant 0 : i32
    return %c0_i32, %c0_i32_0 : i32, i32
  }
  func.func @transform_2(%arg0: i32) -> (i32, i32) {
    %c0_i32 = arith.constant 0 : i32
    %c0_i32_0 = arith.constant 0 : i32
    %c0_i32_1 = arith.constant 0 : i32
    return %c0_i32, %c0_i32_0 : i32, i32
  }
  func.func @transform_3(%arg0: i32) -> (i32, i32) {
    %c0_i32 = arith.constant 0 : i32
    %c0_i32_0 = arith.constant 0 : i32
    %c0_i32_1 = arith.constant 0 : i32
    return %c0_i32, %c0_i32_0 : i32, i32
  }
  func.func @transform_4(%arg0: i32) -> (i32, i32) {
    %c0_i32 = arith.constant 0 : i32
    %c0_i32_0 = arith.constant 0 : i32
    %c0_i32_1 = arith.constant 0 : i32
    return %c0_i32, %c0_i32_0 : i32, i32
  }
  func.func @transform_5(%arg0: i32) -> (i32, i32) {
    %c0_i32 = arith.constant 0 : i32
    %c0_i32_0 = arith.constant 0 : i32
    %c0_i32_1 = arith.constant 0 : i32
    return %c0_i32, %c0_i32_0 : i32, i32
  }
  func.func @transform_6(%arg0: i32) -> (i32, i32) {
    %c0_i32 = arith.constant 0 : i32
    %c0_i32_0 = arith.constant 0 : i32
    %c0_i32_1 = arith.constant 0 : i32
    return %c0_i32, %c0_i32_0 : i32, i32
  }
  func.func @transform_7(%arg0: i32) -> (i32, i32) {
    %c0_i32 = arith.constant 0 : i32
    %c0_i32_0 = arith.constant 0 : i32
    %c0_i32_1 = arith.constant 0 : i32
    return %c0_i32, %c0_i32_0 : i32, i32
  }
  func.func @transform_8(%arg0: i32) -> (i32, i32) {
    %c0_i32 = arith.constant 0 : i32
    %c0_i32_0 = arith.constant 0 : i32
    %c0_i32_1 = arith.constant 0 : i32
    return %c0_i32, %c0_i32_0 : i32, i32
  }
  func.func @transform_9(%arg0: i32) -> (i32, i32) {
    %c0_i32 = arith.constant 0 : i32
    %c0_i32_0 = arith.constant 0 : i32
    return %arg0, %c0_i32 : i32, i32
  }
}

</mosaic_0001>

<llo_original>
// kernel: post_correlation_block.1
$region0: #{post_correlation_block.1}
  #allocation0 [shape = 'u32[]', space=smem, size = 0x4, offset = 0x4, fixed_abs, tag = 'smem constant byte address 0x4 - core index']
  #allocation1 [shape = 'u32[144,128]{1,0:T(1,128)}', space=vmem, size = 0x12000, scoped, tag = 'internal scratch']
  #allocation2 [shape = 'f32[32,128]{1,0:T(8,128)}', space=vmem, size = 0x4000, scoped, tag = 'scratch operand']
  %s0 = inlined_call_operand.vmem [shape: f32[32,64], index: 0, kind: input, shape index: {}]
  %s1 = inlined_call_operand.vmem [shape: bf16[192,128], index: 1, kind: input, shape index: {}]
  %s2 = inlined_call_operand.vmem [shape: f32[1,128], index: 2, kind: input, shape index: {}]
  %s3 = inlined_call_operand.vmem [shape: bf16[384,128], index: 3, kind: input, shape index: {}]
  %s4 = inlined_call_operand.vmem [shape: f32[1,128], index: 4, kind: input, shape index: {}]
  %s5 = inlined_call_operand.vmem [shape: bf16[384,128], index: 5, kind: input, shape index: {}]
  %s6 = inlined_call_operand.vmem [shape: f32[1,128], index: 6, kind: input, shape index: {}]
  %s7 = inlined_call_operand.vmem [shape: bf16[384,64], index: 7, kind: input, shape index: {}]
  %s8 = inlined_call_operand.vmem [shape: f32[1,64], index: 8, kind: input, shape index: {}]
  %s9 = inlined_call_operand.vmem [shape: f32[32,64], index: 9, kind: output, shape index: {}]
  %s10 = sld [smem:[#allocation0]]
  $region46: #{post_correlation_block.1} parent=0
    _
  %s12 = ssub.s32 1, %s10
  %s13 = scalar_select 0, %s12, %s10
  // Predicated region
  $region2: #{post_correlation_block.1} parent=0 // pred_check
    _
  $region3: #{post_correlation_block.1} parent=0 // pred_check_branch
    %15 = sbr.rel (0) target = $region5
  $region4: #{post_correlation_block.1} parent=0 // pred_region
    _
  $region5: #{post_correlation_block.1} parent=0 // pred_fallthru
    _
  // Predicated region
  $region6: #{post_correlation_block.1} parent=0 // pred_check
    _
  $region7: #{post_correlation_block.1} parent=0 // pred_check_branch
    %17 = sbr.rel (0) target = $region9
  $region8: #{post_correlation_block.1} parent=0 // pred_region
    _
  $region9: #{post_correlation_block.1} parent=0 // pred_fallthru
    _
  // Predicated region
  $region10: #{post_correlation_block.1} parent=0 // pred_check
    _
  $region11: #{post_correlation_block.1} parent=0 // pred_check_branch
    %19 = sbr.rel (0) target = $region13
  $region12: #{post_correlation_block.1} parent=0 // pred_region
    _
  $region13: #{post_correlation_block.1} parent=0 // pred_fallthru
    _
  // Predicated region
  $region14: #{post_correlation_block.1} parent=0 // pred_check
    _
  $region15: #{post_correlation_block.1} parent=0 // pred_check_branch
    %21 = sbr.rel (0) target = $region17
  $region16: #{post_correlation_block.1} parent=0 // pred_region
    _
  $region17: #{post_correlation_block.1} parent=0 // pred_fallthru
    _
  // Predicated region
  $region18: #{post_correlation_block.1} parent=0 // pred_check
    _
  $region19: #{post_correlation_block.1} parent=0 // pred_check_branch
    %23 = sbr.rel (0) target = $region21
  $region20: #{post_correlation_block.1} parent=0 // pred_region
    _
  $region21: #{post_correlation_block.1} parent=0 // pred_fallthru
    _
  // Predicated region
  $region22: #{post_correlation_block.1} parent=0 // pred_check
    _
  $region23: #{post_correlation_block.1} parent=0 // pred_check_branch
    %25 = sbr.rel (0) target = $region25
  $region24: #{post_correlation_block.1} parent=0 // pred_region
    _
  $region25: #{post_correlation_block.1} parent=0 // pred_fallthru
    _
  // Predicated region
  $region26: #{post_correlation_block.1} parent=0 // pred_check
    _
  $region27: #{post_correlation_block.1} parent=0 // pred_check_branch
    %27 = sbr.rel (0) target = $region29
  $region28: #{post_correlation_block.1} parent=0 // pred_region
    _
  $region29: #{post_correlation_block.1} parent=0 // pred_fallthru
    _
  // Predicated region
  $region30: #{post_correlation_block.1} parent=0 // pred_check
    _
  $region31: #{post_correlation_block.1} parent=0 // pred_check_branch
    %29 = sbr.rel (0) target = $region33
  $region32: #{post_correlation_block.1} parent=0 // pred_region
    _
  $region33: #{post_correlation_block.1} parent=0 // pred_fallthru
    _
  // Predicated region
  $region34: #{post_correlation_block.1} parent=0 // pred_check
    _
  $region35: #{post_correlation_block.1} parent=0 // pred_check_branch
    %31 = sbr.rel (0) target = $region37
  $region36: #{post_correlation_block.1} parent=0 // pred_region
    _
  $region37: #{post_correlation_block.1} parent=0 // pred_fallthru
    _
  %v33 = vld [vmem:[%s0] sm:$0xff]
  %v34 = vld [vmem:[%s0 + $0x8] sm:$0xff]
  %v35 = vld [vmem:[%s0 + $0x10] sm:$0xff]
  %v36 = vld [vmem:[%s0 + $0x18] sm:$0xff]
  %v37 = vlaneseq
  %v38 = vshrl.u32 %v37, 7
  %v39 = vadd.s32 %v38, 8
  %v40 = vadd.s32 %v38, 16
  %v41 = vadd.s32 %v38, 24
  %vm42 = vcmp.lt.s32.totalorder %v38, 0
  %v43 = vsub.s32 0, %v38
  %v44 = vsel %vm42, %v43, %v38
  %v45 = vshrl.u32 %v44, 4
  %v46 = vand.u32 %v44, 15
  %v47 = vsub.s32 0, %v46
  %v48 = vsel %vm42, %v47, %v46
  %vm49 = vcmp.lt.s32.totalorder %v39, 0
  %v50 = vsub.s32 0, %v39
  %v51 = vsel %vm49, %v50, %v39
  %v52 = vshrl.u32 %v51, 4
  %v53 = vand.u32 %v51, 15
  %v54 = vsub.s32 0, %v53
  %v55 = vsel %vm49, %v54, %v53
  %vm56 = vcmp.lt.s32.totalorder %v40, 0
  %v57 = vsub.s32 0, %v40
  %v58 = vsel %vm56, %v57, %v40
  %v59 = vshrl.u32 %v58, 4
  %v60 = vand.u32 %v58, 15
  %v61 = vsub.s32 0, %v60
  %v62 = vsel %vm56, %v61, %v60
  %vm63 = vcmp.lt.s32.totalorder %v41, 0
  %v64 = vsub.s32 0, %v41
  %v65 = vsel %vm63, %v64, %v41
  %v66 = vshrl.u32 %v65, 4
  %v67 = vand.u32 %v65, 15
  %v68 = vsub.s32 0, %v67
  %v69 = vsel %vm63, %v68, %v67
  %vm70 = vcmp.ne.s32.totalorder %v48, 0
  %vm71 = vcmp.ne.s32.totalorder %v55, 0
  %vm72 = vcmp.ne.s32.totalorder %v62, 0
  %vm73 = vcmp.ne.s32.totalorder %v69, 0
  %vm74 = vcmp.lt.s32.totalorder %v48, 0
  %vm75 = vcmp.lt.s32.totalorder %v55, 0
  %vm76 = vcmp.lt.s32.totalorder %v62, 0
  %vm77 = vcmp.lt.s32.totalorder %v69, 0
  %vm78 = vmand %vm74, %vm70
  %vm79 = vmand %vm75, %vm71
  %vm80 = vmand %vm76, %vm72
  %vm81 = vmand %vm77, %vm73
  %v82 = vadd.s32 %v48, 16
  %v83 = vadd.s32 %v55, 16
  %v84 = vadd.s32 %v62, 16
  %v85 = vadd.s32 %v69, 16
  %v86 = vsel %vm78, %v82, %v48
  %v87 = vsel %vm79, %v83, %v55
  %v88 = vsel %vm80, %v84, %v62
  %v89 = vsel %vm81, %v85, %v69
  %vm90 = vcmp.eq.s32.totalorder %v86, 0
  %vm91 = vcmp.eq.s32.totalorder %v87, 0
  %vm92 = vcmp.eq.s32.totalorder %v88, 0
  %vm93 = vcmp.eq.s32.totalorder %v89, 0
  %vm94 = vcmp.eq.s32.totalorder %v86, 15
  %vm95 = vcmp.eq.s32.totalorder %v87, 15
  %vm96 = vcmp.eq.s32.totalorder %v88, 15
  %vm97 = vcmp.eq.s32.totalorder %v89, 15
  %vm102 = vcmask 1040384
  %v103 = vrot.slane %v33, 7
  %v104 = vrot.slane %v34, 7
  %v105 = vsel %vm102, %v103, %v104
  %v106 = vrot.slane %v35, 7
  %v107 = vsel %vm102, %v104, %v106
  %v108 = vrot.slane %v36, 7
  %v109 = vsel %vm102, %v106, %v108
  %v114 = vsel %vm102, %v33, %v103
  %vm115 = vcmask 1046528
  %v116 = vrot.slane %v33, 1
  %v117 = vrot.slane %v34, 1
  %v118 = vsel %vm115, %v116, %v117
  %v119 = vrot.slane %v35, 1
  %v120 = vsel %vm115, %v117, %v119
  %v121 = vrot.slane %v36, 1
  %v122 = vsel %vm115, %v119, %v121
  %v127 = vsel %vm115, %v121, %v36
  %v128 = vsel %vm90, 1, 0
  %v129 = vsel %vm91, 1, 0
  %v130 = vsel %vm92, 1, 0
  %v131 = vsel %vm93, 1, 0
  %vm132 = vcmp.eq.s32.totalorder %v128, 1
  %vm133 = vcmp.eq.s32.totalorder %v129, 1
  %vm134 = vcmp.eq.s32.totalorder %v130, 1
  %vm135 = vcmp.eq.s32.totalorder %v131, 1
  %v136 = vsel %vm132, %v118, %v114
  %v137 = vsel %vm133, %v120, %v105
  %v138 = vsel %vm134, %v122, %v107
  %v139 = vsel %vm135, %v127, %v109
  %v140 = vsel %vm94, 1, 0
  %v141 = vsel %vm95, 1, 0
  %v142 = vsel %vm96, 1, 0
  %v143 = vsel %vm97, 1, 0
  %vm144 = vcmp.eq.s32.totalorder %v140, 1
  %vm145 = vcmp.eq.s32.totalorder %v141, 1
  %vm146 = vcmp.eq.s32.totalorder %v142, 1
  %vm147 = vcmp.eq.s32.totalorder %v143, 1
  %v148 = vsel %vm144, %v114, %v118
  %v149 = vsel %vm145, %v105, %v120
  %v150 = vsel %vm146, %v107, %v122
  %v151 = vsel %vm147, %v109, %v127
  %152 = vrot.lane.b32.xlu0 %v33, 64
  %v153 = vpop.permute.xlu0 %152
  %154 = vrot.lane.b32.xlu0 %v34, 64
  %v155 = vpop.permute.xlu0 %154
  %156 = vrot.lane.b32.xlu0 %v35, 64
  %v157 = vpop.permute.xlu0 %156
  %158 = vrot.lane.b32.xlu0 %v36, 64
  %v159 = vpop.permute.xlu0 %158
  %vm164 = vcmask 523264
  %v165 = vsel %vm164, %v136, %v153
  %v166 = vsel %vm164, %v137, %v155
  %v167 = vsel %vm164, %v138, %v157
  %v168 = vsel %vm164, %v139, %v159
  %v169 = vpack.c.bf16 %v166, %v165
  %v170 = vpack.c.bf16 %v149, %v148
  %v171 = vpack.c.bf16 %v168, %v167
  %v172 = vpack.c.bf16 %v151, %v150
  %v173 = vld [vmem:[%s1] sm:$0xf]
  %v174 = vld [vmem:[%s1 + $0x4] sm:$0xf]
  %v175 = vld [vmem:[%s1 + $0x8] sm:$0xf]
  %v176 = vld [vmem:[%s1 + $0xc] sm:$0xf]
  %v177 = vld [vmem:[%s1 + $0x10] sm:$0xf]
  %v178 = vld [vmem:[%s1 + $0x14] sm:$0xf]
  %v179 = vld [vmem:[%s1 + $0x18] sm:$0xf]
  %v180 = vld [vmem:[%s1 + $0x1c] sm:$0xf]
  %v181 = vld [vmem:[%s1 + $0x20] sm:$0xf]
  %v182 = vld [vmem:[%s1 + $0x24] sm:$0xf]
  %v183 = vld [vmem:[%s1 + $0x28] sm:$0xf]
  %v184 = vld [vmem:[%s1 + $0x2c] sm:$0xf]
  %v185 = vld [vmem:[%s1 + $0x30] sm:$0xf]
  %v186 = vld [vmem:[%s1 + $0x34] sm:$0xf]
  %v187 = vld [vmem:[%s1 + $0x38] sm:$0xf]
  %v188 = vld [vmem:[%s1 + $0x3c] sm:$0xf]
  %v189 = vld [vmem:[%s1 + $0x40] sm:$0xf]
  %v190 = vld [vmem:[%s1 + $0x44] sm:$0xf]
  %v191 = vld [vmem:[%s1 + $0x48] sm:$0xf]
  %v192 = vld [vmem:[%s1 + $0x4c] sm:$0xf]
  %v193 = vld [vmem:[%s1 + $0x50] sm:$0xf]
  %v194 = vld [vmem:[%s1 + $0x54] sm:$0xf]
  %v195 = vld [vmem:[%s1 + $0x58] sm:$0xf]
  %v196 = vld [vmem:[%s1 + $0x5c] sm:$0xf]
  %v197 = vld [vmem:[%s2] sm:$0x1]
  %v199 = vlaneseq
  %v200 = vshrl.u32 %v199, 7
  %v201 = vsub.s32 0, %v200
  %v202 = vrot.slane %v197, %v201
  %v228 = vunpack.c.l.b16 %v173
  %v229 = vunpack.c.l.b16 %v174
  %v230 = vunpack.c.l.b16 %v175
  %v231 = vunpack.c.l.b16 %v176
  %v232 = vunpack.c.l.b16 %v177
  %v233 = vunpack.c.l.b16 %v178
  %v234 = vunpack.c.l.b16 %v179
  %v235 = vunpack.c.l.b16 %v180
  %v236 = vunpack.c.l.b16 %v181
  %v237 = vunpack.c.l.b16 %v182
  %v238 = vunpack.c.l.b16 %v183
  %v239 = vunpack.c.l.b16 %v184
  %v240 = vunpack.c.l.b16 %v185
  %v241 = vunpack.c.l.b16 %v186
  %v242 = vunpack.c.l.b16 %v187
  %v243 = vunpack.c.l.b16 %v188
  %v244 = vunpack.c.l.b16 %v189
  %v245 = vunpack.c.l.b16 %v190
  %v246 = vunpack.c.l.b16 %v191
  %v247 = vunpack.c.l.b16 %v192
  %v248 = vunpack.c.l.b16 %v193
  %v249 = vunpack.c.l.b16 %v194
  %v250 = vunpack.c.l.b16 %v195
  %v251 = vunpack.c.l.b16 %v196
  %v252 = vpack.c.b16 %v229, %v228
  %v253 = vpack.c.b16 %v231, %v230
  %v254 = vpack.c.b16 %v233, %v232
  %v255 = vpack.c.b16 %v235, %v234
  %v256 = vpack.c.b16 %v237, %v236
  %v257 = vpack.c.b16 %v239, %v238
  %v258 = vpack.c.b16 %v241, %v240
  %v259 = vpack.c.b16 %v243, %v242
  %v260 = vpack.c.b16 %v245, %v244
  %v261 = vpack.c.b16 %v247, %v246
  %v262 = vpack.c.b16 %v249, %v248
  %v263 = vpack.c.b16 %v251, %v250
  %v277 = vsel %vm164, %v170, 0
  %v280 = vsel %vm164, %v172, 0
  %282 = vmatprep.subr.bf16.mxu0 0
  %283 = vmatpush1.bf16.msra.mxu0 %v252
  %284 = vmatprep.subr.bf16.mxu0 0
  %285 = vmatpush1.bf16.msra.mxu0 %v253
  %286 = vmatprep.subr.bf16.mxu0 0
  %287 = vmatpush1.bf16.msra.mxu0 %v254
  %288 = vmatprep.subr.bf16.mxu0 0
  %289 = vmatpush1.bf16.msra.mxu0 %v255
  %290 = vmatprep.subr.bf16.mxu0 0
  %291 = vmatpush1.bf16.msra.mxu0 %v256
  %292 = vmatprep.subr.bf16.mxu0 0
  %293 = vmatpush1.bf16.msra.mxu0 %v257
  %294 = vmatprep.subr.bf16.mxu0 0
  %295 = vmatpush1.bf16.msra.mxu0 %v258
  %296 = vmatprep.subr.bf16.mxu0 0
  %297 = vmatpush1.bf16.msra.mxu0 %v259
  %298 = vmatprep.subr.bf16.mxu0 0
  %299 = vmatpush1.bf16.msra.mxu0 %v260
  %300 = vmatprep.subr.bf16.mxu0 0
  %301 = vmatpush1.bf16.msra.mxu0 %v261
  %302 = vmatprep.subr.bf16.mxu0 0
  %303 = vmatpush1.bf16.msra.mxu0 %v262
  %304 = vmatprep.subr.bf16.mxu0 0
  %305 = vmatpush1.bf16.msra.mxu0 %v263
  %306 = vmatprep.subr.bf16.mxu0 0
  %307 = vmatpush1.bf16.msra.mxu0 0
  %308 = vmatprep.subr.bf16.mxu0 0
  %309 = vmatpush1.bf16.msra.mxu0 0
  %310 = vmatprep.subr.bf16.mxu0 0
  %311 = vmatpush1.bf16.msra.mxu0 0
  %312 = vmatprep.subr.bf16.mxu0 0
  %313 = vmatpush1.bf16.msra.mxu0 0
  %314 = vmatprep.mubr.bf16.mxu0 %v277
  %315 = vmatmul.mubr.bf16.gmra.mrb[0].mxu0 %v169
  %v316 = vpop.f32.mrb[0].mxu0
  %v317 = vadd.f32 %v202, %v316
  %v318 = vpop.f32.mrb[0].mxu0
  %v319 = vpop.f32.mrb[0].mxu0
  %v320 = vadd.f32 %v202, %v319
  %v321 = vpop.f32.mrb[0].mxu0
  %322 = vmatprep.mubr.bf16.mxu0 %v280
  %323 = vmatmul.mubr.bf16.gmra.mrb[0].mxu0 %v171
  %v324 = vpop.f32.mrb[0].mxu0
  %v325 = vadd.f32 %v202, %v324
  %v326 = vpop.f32.mrb[0].mxu0
  %v327 = vpop.f32.mrb[0].mxu0
  %v328 = vadd.f32 %v202, %v327
  %v329 = vpop.f32.mrb[0].mxu0
  %330 = vdwg.mxu0
  %331 = vst [vmem:[#allocation2] sm:$0xff] %v317
  %332 = vst [vmem:[#allocation2 + $0x8] sm:$0xff] %v320
  %333 = vst [vmem:[#allocation2 + $0x10] sm:$0xff] %v325
  %334 = vst [vmem:[#allocation2 + $0x18] sm:$0xff] %v328
  %v335 = vld [vmem:[#allocation2] sm:$0xff]
  %v336 = vld [vmem:[#allocation2 + $0x8] sm:$0xff]
  %v337 = vld [vmem:[#allocation2 + $0x10] sm:$0xff]
  %v338 = vld [vmem:[#allocation2 + $0x18] sm:$0xff]
  %v343 = vrot.slane %v335, 7
  %v344 = vrot.slane %v336, 7
  %v345 = vsel %vm102, %v343, %v344
  %v346 = vrot.slane %v337, 7
  %v347 = vsel %vm102, %v344, %v346
  %v348 = vrot.slane %v338, 7
  %v349 = vsel %vm102, %v346, %v348
  %v354 = vsel %vm102, %v335, %v343
  %v355 = vrot.slane %v335, 1
  %v356 = vrot.slane %v336, 1
  %v357 = vsel %vm115, %v355, %v356
  %v358 = vrot.slane %v337, 1
  %v359 = vsel %vm115, %v356, %v358
  %v360 = vrot.slane %v338, 1
  %v361 = vsel %vm115, %v358, %v360
  %v366 = vsel %vm115, %v360, %v338
  %v367 = vsel %vm132, %v357, %v354
  %v368 = vsel %vm133, %v359, %v345
  %v369 = vsel %vm134, %v361, %v347
  %v370 = vsel %vm135, %v366, %v349
  %v371 = vsel %vm144, %v354, %v357
  %v372 = vsel %vm145, %v345, %v359
  %v373 = vsel %vm146, %v347, %v361
  %v374 = vsel %vm147, %v349, %v366
  %v375 = vpack.c.bf16 %v368, %v367
  %v376 = vpack.c.bf16 %v336, %v335
  %v377 = vpack.c.bf16 %v372, %v371
  %v378 = vpack.c.bf16 %v370, %v369
  %v379 = vpack.c.bf16 %v338, %v337
  %v380 = vpack.c.bf16 %v374, %v373
  %v381 = vld [vmem:[%s3] sm:$0xf]
  %v382 = vld [vmem:[%s3 + $0x4] sm:$0xf]
  %v383 = vld [vmem:[%s3 + $0x8] sm:$0xf]
  %v384 = vld [vmem:[%s3 + $0xc] sm:$0xf]
  %v385 = vld [vmem:[%s3 + $0x10] sm:$0xf]
  %v386 = vld [vmem:[%s3 + $0x14] sm:$0xf]
  %v387 = vld [vmem:[%s3 + $0x18] sm:$0xf]
  %v388 = vld [vmem:[%s3 + $0x1c] sm:$0xf]
  %v389 = vld [vmem:[%s3 + $0x20] sm:$0xf]
  %v390 = vld [vmem:[%s3 + $0x24] sm:$0xf]
  %v391 = vld [vmem:[%s3 + $0x28] sm:$0xf]
  %v392 = vld [vmem:[%s3 + $0x2c] sm:$0xf]
  %v393 = vld [vmem:[%s3 + $0x30] sm:$0xf]
  %v394 = vld [vmem:[%s3 + $0x34] sm:$0xf]
  %v395 = vld [vmem:[%s3 + $0x38] sm:$0xf]
  %v396 = vld [vmem:[%s3 + $0x3c] sm:$0xf]
  %v397 = vld [vmem:[%s3 + $0x40] sm:$0xf]
  %v398 = vld [vmem:[%s3 + $0x44] sm:$0xf]
  %v399 = vld [vmem:[%s3 + $0x48] sm:$0xf]
  %v400 = vld [vmem:[%s3 + $0x4c] sm:$0xf]
  %v401 = vld [vmem:[%s3 + $0x50] sm:$0xf]
  %v402 = vld [vmem:[%s3 + $0x54] sm:$0xf]
  %v403 = vld [vmem:[%s3 + $0x58] sm:$0xf]
  %v404 = vld [vmem:[%s3 + $0x5c] sm:$0xf]
  %v405 = vld [vmem:[%s3 + $0x60] sm:$0xf]
  %v406 = vld [vmem:[%s3 + $0x64] sm:$0xf]
  %v407 = vld [vmem:[%s3 + $0x68] sm:$0xf]
  %v408 = vld [vmem:[%s3 + $0x6c] sm:$0xf]
  %v409 = vld [vmem:[%s3 + $0x70] sm:$0xf]
  %v410 = vld [vmem:[%s3 + $0x74] sm:$0xf]
  %v411 = vld [vmem:[%s3 + $0x78] sm:$0xf]
  %v412 = vld [vmem:[%s3 + $0x7c] sm:$0xf]
  %v413 = vld [vmem:[%s3 + $0x80] sm:$0xf]
  %v414 = vld [vmem:[%s3 + $0x84] sm:$0xf]
  %v415 = vld [vmem:[%s3 + $0x88] sm:$0xf]
  %v416 = vld [vmem:[%s3 + $0x8c] sm:$0xf]
  %v417 = vld [vmem:[%s3 + $0x90] sm:$0xf]
  %v418 = vld [vmem:[%s3 + $0x94] sm:$0xf]
  %v419 = vld [vmem:[%s3 + $0x98] sm:$0xf]
  %v420 = vld [vmem:[%s3 + $0x9c] sm:$0xf]
  %v421 = vld [vmem:[%s3 + $0xa0] sm:$0xf]
  %v422 = vld [vmem:[%s3 + $0xa4] sm:$0xf]
  %v423 = vld [vmem:[%s3 + $0xa8] sm:$0xf]
  %v424 = vld [vmem:[%s3 + $0xac] sm:$0xf]
  %v425 = vld [vmem:[%s3 + $0xb0] sm:$0xf]
  %v426 = vld [vmem:[%s3 + $0xb4] sm:$0xf]
  %v427 = vld [vmem:[%s3 + $0xb8] sm:$0xf]
  %v428 = vld [vmem:[%s3 + $0xbc] sm:$0xf]
  %v429 = vld [vmem:[%s4] sm:$0x1]
  %v431 = vlaneseq
  %v432 = vshrl.u32 %v431, 7
  %v433 = vsub.s32 0, %v432
  %v434 = vrot.slane %v429, %v433
  %v484 = vunpack.c.l.b16 %v381
  %v485 = vunpack.c.l.b16 %v382
  %v486 = vunpack.c.l.b16 %v383
  %v487 = vunpack.c.l.b16 %v384
  %v488 = vunpack.c.l.b16 %v385
  %v489 = vunpack.c.l.b16 %v386
  %v490 = vunpack.c.l.b16 %v387
  %v491 = vunpack.c.l.b16 %v388
  %v492 = vunpack.c.l.b16 %v389
  %v493 = vunpack.c.l.b16 %v390
  %v494 = vunpack.c.l.b16 %v391
  %v495 = vunpack.c.l.b16 %v392
  %v496 = vunpack.c.l.b16 %v393
  %v497 = vunpack.c.l.b16 %v394
  %v498 = vunpack.c.l.b16 %v395
  %v499 = vunpack.c.l.b16 %v396
  %v500 = vunpack.c.l.b16 %v397
  %v501 = vunpack.c.l.b16 %v398
  %v502 = vunpack.c.l.b16 %v399
  %v503 = vunpack.c.l.b16 %v400
  %v504 = vunpack.c.l.b16 %v401
  %v505 = vunpack.c.l.b16 %v402
  %v506 = vunpack.c.l.b16 %v403
  %v507 = vunpack.c.l.b16 %v404
  %v508 = vunpack.c.l.b16 %v405
  %v509 = vunpack.c.l.b16 %v406
  %v510 = vunpack.c.l.b16 %v407
  %v511 = vunpack.c.l.b16 %v408
  %v512 = vunpack.c.l.b16 %v409
  %v513 = vunpack.c.l.b16 %v410
  %v514 = vunpack.c.l.b16 %v411
  %v515 = vunpack.c.l.b16 %v412
  %v516 = vunpack.c.l.b16 %v413
  %v517 = vunpack.c.l.b16 %v414
  %v518 = vunpack.c.l.b16 %v415
  %v519 = vunpack.c.l.b16 %v416
  %v520 = vunpack.c.l.b16 %v417
  %v521 = vunpack.c.l.b16 %v418
  %v522 = vunpack.c.l.b16 %v419
  %v523 = vunpack.c.l.b16 %v420
  %v524 = vunpack.c.l.b16 %v421
  %v525 = vunpack.c.l.b16 %v422
  %v526 = vunpack.c.l.b16 %v423
  %v527 = vunpack.c.l.b16 %v424
  %v528 = vunpack.c.l.b16 %v425
  %v529 = vunpack.c.l.b16 %v426
  %v530 = vunpack.c.l.b16 %v427
  %v531 = vunpack.c.l.b16 %v428
  %v532 = vpack.c.b16 %v485, %v484
  %v533 = vpack.c.b16 %v487, %v486
  %v534 = vpack.c.b16 %v489, %v488
  %v535 = vpack.c.b16 %v491, %v490
  %v536 = vpack.c.b16 %v493, %v492
  %v537 = vpack.c.b16 %v495, %v494
  %v538 = vpack.c.b16 %v497, %v496
  %v539 = vpack.c.b16 %v499, %v498
  %v540 = vpack.c.b16 %v501, %v500
  %v541 = vpack.c.b16 %v503, %v502
  %v542 = vpack.c.b16 %v505, %v504
  %v543 = vpack.c.b16 %v507, %v506
  %v544 = vpack.c.b16 %v509, %v508
  %v545 = vpack.c.b16 %v511, %v510
  %v546 = vpack.c.b16 %v513, %v512
  %v547 = vpack.c.b16 %v515, %v514
  %v548 = vpack.c.b16 %v517, %v516
  %v549 = vpack.c.b16 %v519, %v518
  %v550 = vpack.c.b16 %v521, %v520
  %v551 = vpack.c.b16 %v523, %v522
  %v552 = vpack.c.b16 %v525, %v524
  %v553 = vpack.c.b16 %v527, %v526
  %v554 = vpack.c.b16 %v529, %v528
  %v555 = vpack.c.b16 %v531, %v530
  %580 = vmatprep.subr.bf16.mxu0 0
  %581 = vmatpush1.bf16.msra.mxu0 %v532
  %582 = vmatprep.subr.bf16.mxu0 0
  %583 = vmatpush1.bf16.msra.mxu0 %v533
  %584 = vmatprep.subr.bf16.mxu0 0
  %585 = vmatpush1.bf16.msra.mxu0 %v534
  %586 = vmatprep.subr.bf16.mxu0 0
  %587 = vmatpush1.bf16.msra.mxu0 %v535
  %588 = vmatprep.subr.bf16.mxu0 0
  %589 = vmatpush1.bf16.msra.mxu0 %v536
  %590 = vmatprep.subr.bf16.mxu0 0
  %591 = vmatpush1.bf16.msra.mxu0 %v537
  %592 = vmatprep.subr.bf16.mxu0 0
  %593 = vmatpush1.bf16.msra.mxu0 %v538
  %594 = vmatprep.subr.bf16.mxu0 0
  %595 = vmatpush1.bf16.msra.mxu0 %v539
  %596 = vmatprep.subr.bf16.mxu0 0
  %597 = vmatpush1.bf16.msra.mxu0 %v540
  %598 = vmatprep.subr.bf16.mxu0 0
  %599 = vmatpush1.bf16.msra.mxu0 %v541
  %600 = vmatprep.subr.bf16.mxu0 0
  %601 = vmatpush1.bf16.msra.mxu0 %v542
  %602 = vmatprep.subr.bf16.mxu0 0
  %603 = vmatpush1.bf16.msra.mxu0 %v543
  %604 = vmatprep.subr.bf16.mxu0 0
  %605 = vmatpush1.bf16.msra.mxu0 %v544
  %606 = vmatprep.subr.bf16.mxu0 0
  %607 = vmatpush1.bf16.msra.mxu0 %v545
  %608 = vmatprep.subr.bf16.mxu0 0
  %609 = vmatpush1.bf16.msra.mxu0 %v546
  %610 = vmatprep.subr.bf16.mxu0 0
  %611 = vmatpush1.bf16.msra.mxu0 %v547
  %612 = vmatprep.mubr.bf16.mxu0 %v376
  %613 = vmatmul.mubr.bf16.gmra.mrb[0].mxu0 %v375
  %v614 = vpop.f32.mrb[0].mxu0
  %v615 = vadd.f32 %v434, %v614
  %v616 = vpop.f32.mrb[0].mxu0
  %v617 = vpop.f32.mrb[0].mxu0
  %v618 = vadd.f32 %v434, %v617
  %v619 = vpop.f32.mrb[0].mxu0
  %620 = vmatprep.mubr.bf16.mxu0 %v379
  %621 = vmatmul.mubr.bf16.gmra.mrb[0].mxu0 %v378
  %v622 = vpop.f32.mrb[0].mxu0
  %v623 = vadd.f32 %v434, %v622
  %v624 = vpop.f32.mrb[0].mxu0
  %v625 = vpop.f32.mrb[0].mxu0
  %v626 = vadd.f32 %v434, %v625
  %v627 = vpop.f32.mrb[0].mxu0
  %628 = vdwg.mxu0
  %629 = vmatprep.subr.bf16.mxu0 0
  %630 = vmatpush1.bf16.msra.mxu0 %v548
  %631 = vmatprep.subr.bf16.mxu0 0
  %632 = vmatpush1.bf16.msra.mxu0 %v549
  %633 = vmatprep.subr.bf16.mxu0 0
  %634 = vmatpush1.bf16.msra.mxu0 %v550
  %635 = vmatprep.subr.bf16.mxu0 0
  %636 = vmatpush1.bf16.msra.mxu0 %v551
  %637 = vmatprep.subr.bf16.mxu0 0
  %638 = vmatpush1.bf16.msra.mxu0 %v552
  %639 = vmatprep.subr.bf16.mxu0 0
  %640 = vmatpush1.bf16.msra.mxu0 %v553
  %641 = vmatprep.subr.bf16.mxu0 0
  %642 = vmatpush1.bf16.msra.mxu0 %v554
  %643 = vmatprep.subr.bf16.mxu0 0
  %644 = vmatpush1.bf16.msra.mxu0 %v555
  %645 = vmatprep.subr.bf16.mxu0 0
  %646 = vmatpush1.bf16.msra.mxu0 0
  %647 = vmatprep.subr.bf16.mxu0 0
  %648 = vmatpush1.bf16.msra.mxu0 0
  %649 = vmatprep.subr.bf16.mxu0 0
  %650 = vmatpush1.bf16.msra.mxu0 0
  %651 = vmatprep.subr.bf16.mxu0 0
  %652 = vmatpush1.bf16.msra.mxu0 0
  %653 = vmatprep.subr.bf16.mxu0 0
  %654 = vmatpush1.bf16.msra.mxu0 0
  %655 = vmatprep.subr.bf16.mxu0 0
  %656 = vmatpush1.bf16.msra.mxu0 0
  %657 = vmatprep.subr.bf16.mxu0 0
  %658 = vmatpush1.bf16.msra.mxu0 0
  %659 = vmatprep.subr.bf16.mxu0 0
  %660 = vmatpush1.bf16.msra.mxu0 0
  %661 = vmatprep.mubr.bf16.mxu0 0
  %662 = vmatmul.mubr.bf16.gmra.mrb[0].mxu0 %v377
  %v663 = vpop.f32.mrb[0].mxu0
  %v664 = vadd.f32 %v615, %v663
  %v665 = vpop.f32.mrb[0].mxu0
  %v666 = vpop.f32.mrb[0].mxu0
  %v667 = vadd.f32 %v618, %v666
  %v668 = vpop.f32.mrb[0].mxu0
  %669 = vmatprep.mubr.bf16.mxu0 0
  %670 = vmatmul.mubr.bf16.gmra.mrb[0].mxu0 %v380
  %v671 = vpop.f32.mrb[0].mxu0
  %v672 = vadd.f32 %v623, %v671
  %v673 = vpop.f32.mrb[0].mxu0
  %v674 = vpop.f32.mrb[0].mxu0
  %v675 = vadd.f32 %v626, %v674
  %v676 = vpop.f32.mrb[0].mxu0
  %677 = vdwg.mxu0
  %v678 = vmax.f32 %v664, 0.0
  %v679 = vmax.f32 %v667, 0.0
  %v680 = vmax.f32 %v672, 0.0
  %v681 = vmax.f32 %v675, 0.0
  %v686 = vrot.slane %v678, 7
  %v687 = vrot.slane %v679, 7
  %v688 = vsel %vm102, %v686, %v687
  %v689 = vrot.slane %v680, 7
  %v690 = vsel %vm102, %v687, %v689
  %v691 = vrot.slane %v681, 7
  %v692 = vsel %vm102, %v689, %v691
  %v697 = vsel %vm102, %v678, %v686
  %v698 = vrot.slane %v678, 1
  %v699 = vrot.slane %v679, 1
  %v700 = vsel %vm115, %v698, %v699
  %v701 = vrot.slane %v680, 1
  %v702 = vsel %vm115, %v699, %v701
  %v703 = vrot.slane %v681, 1
  %v704 = vsel %vm115, %v701, %v703
  %v709 = vsel %vm115, %v703, %v681
  %v710 = vsel %vm132, %v700, %v697
  %v711 = vsel %vm133, %v702, %v688
  %v712 = vsel %vm134, %v704, %v690
  %v713 = vsel %vm135, %v709, %v692
  %v714 = vsel %vm144, %v697, %v700
  %v715 = vsel %vm145, %v688, %v702
  %v716 = vsel %vm146, %v690, %v704
  %v717 = vsel %vm147, %v692, %v709
  %v718 = vpack.c.bf16 %v711, %v710
  %v719 = vpack.c.bf16 %v679, %v678
  %v720 = vpack.c.bf16 %v715, %v714
  %v721 = vpack.c.bf16 %v713, %v712
  %v722 = vpack.c.bf16 %v681, %v680
  %v723 = vpack.c.bf16 %v717, %v716
  %v724 = vld [vmem:[%s5] sm:$0xf]
  %v725 = vld [vmem:[%s5 + $0x4] sm:$0xf]
  %v726 = vld [vmem:[%s5 + $0x8] sm:$0xf]
  %v727 = vld [vmem:[%s5 + $0xc] sm:$0xf]
  %v728 = vld [vmem:[%s5 + $0x10] sm:$0xf]
  %v729 = vld [vmem:[%s5 + $0x14] sm:$0xf]
  %v730 = vld [vmem:[%s5 + $0x18] sm:$0xf]
  %v731 = vld [vmem:[%s5 + $0x1c] sm:$0xf]
  %v732 = vld [vmem:[%s5 + $0x20] sm:$0xf]
  %v733 = vld [vmem:[%s5 + $0x24] sm:$0xf]
  %v734 = vld [vmem:[%s5 + $0x28] sm:$0xf]
  %v735 = vld [vmem:[%s5 + $0x2c] sm:$0xf]
  %v736 = vld [vmem:[%s5 + $0x30] sm:$0xf]
  %v737 = vld [vmem:[%s5 + $0x34] sm:$0xf]
  %v738 = vld [vmem:[%s5 + $0x38] sm:$0xf]
  %v739 = vld [vmem:[%s5 + $0x3c] sm:$0xf]
  %v740 = vld [vmem:[%s5 + $0x40] sm:$0xf]
  %v741 = vld [vmem:[%s5 + $0x44] sm:$0xf]
  %v742 = vld [vmem:[%s5 + $0x48] sm:$0xf]
  %v743 = vld [vmem:[%s5 + $0x4c] sm:$0xf]
  %v744 = vld [vmem:[%s5 + $0x50] sm:$0xf]
  %v745 = vld [vmem:[%s5 + $0x54] sm:$0xf]
  %v746 = vld [vmem:[%s5 + $0x58] sm:$0xf]
  %v747 = vld [vmem:[%s5 + $0x5c] sm:$0xf]
  %v748 = vld [vmem:[%s5 + $0x60] sm:$0xf]
  %v749 = vld [vmem:[%s5 + $0x64] sm:$0xf]
  %v750 = vld [vmem:[%s5 + $0x68] sm:$0xf]
  %v751 = vld [vmem:[%s5 + $0x6c] sm:$0xf]
  %v752 = vld [vmem:[%s5 + $0x70] sm:$0xf]
  %v753 = vld [vmem:[%s5 + $0x74] sm:$0xf]
  %v754 = vld [vmem:[%s5 + $0x78] sm:$0xf]
  %v755 = vld [vmem:[%s5 + $0x7c] sm:$0xf]
  %v756 = vld [vmem:[%s5 + $0x80] sm:$0xf]
  %v757 = vld [vmem:[%s5 + $0x84] sm:$0xf]
  %v758 = vld [vmem:[%s5 + $0x88] sm:$0xf]
  %v759 = vld [vmem:[%s5 + $0x8c] sm:$0xf]
  %v760 = vld [vmem:[%s5 + $0x90] sm:$0xf]
  %v761 = vld [vmem:[%s5 + $0x94] sm:$0xf]
  %v762 = vld [vmem:[%s5 + $0x98] sm:$0xf]
  %v763 = vld [vmem:[%s5 + $0x9c] sm:$0xf]
  %v764 = vld [vmem:[%s5 + $0xa0] sm:$0xf]
  %v765 = vld [vmem:[%s5 + $0xa4] sm:$0xf]
  %v766 = vld [vmem:[%s5 + $0xa8] sm:$0xf]
  %v767 = vld [vmem:[%s5 + $0xac] sm:$0xf]
  %v768 = vld [vmem:[%s5 + $0xb0] sm:$0xf]
  %v769 = vld [vmem:[%s5 + $0xb4] sm:$0xf]
  %v770 = vld [vmem:[%s5 + $0xb8] sm:$0xf]
  %v771 = vld [vmem:[%s5 + $0xbc] sm:$0xf]
  %v772 = vld [vmem:[%s6] sm:$0x1]
  %v774 = vlaneseq
  %v775 = vshrl.u32 %v774, 7
  %v776 = vsub.s32 0, %v775
  %v777 = vrot.slane %v772, %v776
  %v827 = vunpack.c.l.b16 %v724
  %v828 = vunpack.c.l.b16 %v725
  %v829 = vunpack.c.l.b16 %v726
  %v830 = vunpack.c.l.b16 %v727
  %v831 = vunpack.c.l.b16 %v728
  %v832 = vunpack.c.l.b16 %v729
  %v833 = vunpack.c.l.b16 %v730
  %v834 = vunpack.c.l.b16 %v731
  %v835 = vunpack.c.l.b16 %v732
  %v836 = vunpack.c.l.b16 %v733
  %v837 = vunpack.c.l.b16 %v734
  %v838 = vunpack.c.l.b16 %v735
  %v839 = vunpack.c.l.b16 %v736
  %v840 = vunpack.c.l.b16 %v737
  %v841 = vunpack.c.l.b16 %v738
  %v842 = vunpack.c.l.b16 %v739
  %v843 = vunpack.c.l.b16 %v740
  %v844 = vunpack.c.l.b16 %v741
  %v845 = vunpack.c.l.b16 %v742
  %v846 = vunpack.c.l.b16 %v743
  %v847 = vunpack.c.l.b16 %v744
  %v848 = vunpack.c.l.b16 %v745
  %v849 = vunpack.c.l.b16 %v746
  %v850 = vunpack.c.l.b16 %v747
  %v851 = vunpack.c.l.b16 %v748
  %v852 = vunpack.c.l.b16 %v749
  %v853 = vunpack.c.l.b16 %v750
  %v854 = vunpack.c.l.b16 %v751
  %v855 = vunpack.c.l.b16 %v752
  %v856 = vunpack.c.l.b16 %v753
  %v857 = vunpack.c.l.b16 %v754
  %v858 = vunpack.c.l.b16 %v755
  %v859 = vunpack.c.l.b16 %v756
  %v860 = vunpack.c.l.b16 %v757
  %v861 = vunpack.c.l.b16 %v758
  %v862 = vunpack.c.l.b16 %v759
  %v863 = vunpack.c.l.b16 %v760
  %v864 = vunpack.c.l.b16 %v761
  %v865 = vunpack.c.l.b16 %v762
  %v866 = vunpack.c.l.b16 %v763
  %v867 = vunpack.c.l.b16 %v764
  %v868 = vunpack.c.l.b16 %v765
  %v869 = vunpack.c.l.b16 %v766
  %v870 = vunpack.c.l.b16 %v767
  %v871 = vunpack.c.l.b16 %v768
  %v872 = vunpack.c.l.b16 %v769
  %v873 = vunpack.c.l.b16 %v770
  %v874 = vunpack.c.l.b16 %v771
  %v875 = vpack.c.b16 %v828, %v827
  %v876 = vpack.c.b16 %v830, %v829
  %v877 = vpack.c.b16 %v832, %v831
  %v878 = vpack.c.b16 %v834, %v833
  %v879 = vpack.c.b16 %v836, %v835
  %v880 = vpack.c.b16 %v838, %v837
  %v881 = vpack.c.b16 %v840, %v839
  %v882 = vpack.c.b16 %v842, %v841
  %v883 = vpack.c.b16 %v844, %v843
  %v884 = vpack.c.b16 %v846, %v845
  %v885 = vpack.c.b16 %v848, %v847
  %v886 = vpack.c.b16 %v850, %v849
  %v887 = vpack.c.b16 %v852, %v851
  %v888 = vpack.c.b16 %v854, %v853
  %v889 = vpack.c.b16 %v856, %v855
  %v890 = vpack.c.b16 %v858, %v857
  %v891 = vpack.c.b16 %v860, %v859
  %v892 = vpack.c.b16 %v862, %v861
  %v893 = vpack.c.b16 %v864, %v863
  %v894 = vpack.c.b16 %v866, %v865
  %v895 = vpack.c.b16 %v868, %v867
  %v896 = vpack.c.b16 %v870, %v869
  %v897 = vpack.c.b16 %v872, %v871
  %v898 = vpack.c.b16 %v874, %v873
  %923 = vmatprep.subr.bf16.mxu0 0
  %924 = vmatpush1.bf16.msra.mxu0 %v875
  %925 = vmatprep.subr.bf16.mxu0 0
  %926 = vmatpush1.bf16.msra.mxu0 %v876
  %927 = vmatprep.subr.bf16.mxu0 0
  %928 = vmatpush1.bf16.msra.mxu0 %v877
  %929 = vmatprep.subr.bf16.mxu0 0
  %930 = vmatpush1.bf16.msra.mxu0 %v878
  %931 = vmatprep.subr.bf16.mxu0 0
  %932 = vmatpush1.bf16.msra.mxu0 %v879
  %933 = vmatprep.subr.bf16.mxu0 0
  %934 = vmatpush1.bf16.msra.mxu0 %v880
  %935 = vmatprep.subr.bf16.mxu0 0
  %936 = vmatpush1.bf16.msra.mxu0 %v881
  %937 = vmatprep.subr.bf16.mxu0 0
  %938 = vmatpush1.bf16.msra.mxu0 %v882
  %939 = vmatprep.subr.bf16.mxu0 0
  %940 = vmatpush1.bf16.msra.mxu0 %v883
  %941 = vmatprep.subr.bf16.mxu0 0
  %942 = vmatpush1.bf16.msra.mxu0 %v884
  %943 = vmatprep.subr.bf16.mxu0 0
  %944 = vmatpush1.bf16.msra.mxu0 %v885
  %945 = vmatprep.subr.bf16.mxu0 0
  %946 = vmatpush1.bf16.msra.mxu0 %v886
  %947 = vmatprep.subr.bf16.mxu0 0
  %948 = vmatpush1.bf16.msra.mxu0 %v887
  %949 = vmatprep.subr.bf16.mxu0 0
  %950 = vmatpush1.bf16.msra.mxu0 %v888
  %951 = vmatprep.subr.bf16.mxu0 0
  %952 = vmatpush1.bf16.msra.mxu0 %v889
  %953 = vmatprep.subr.bf16.mxu0 0
  %954 = vmatpush1.bf16.msra.mxu0 %v890
  %955 = vmatprep.mubr.bf16.mxu0 %v719
  %956 = vmatmul.mubr.bf16.gmra.mrb[0].mxu0 %v718
  %v957 = vpop.f32.mrb[0].mxu0
  %v958 = vadd.f32 %v777, %v957
  %v959 = vpop.f32.mrb[0].mxu0
  %v960 = vpop.f32.mrb[0].mxu0
  %v961 = vadd.f32 %v777, %v960
  %v962 = vpop.f32.mrb[0].mxu0
  %963 = vmatprep.mubr.bf16.mxu0 %v722
  %964 = vmatmul.mubr.bf16.gmra.mrb[0].mxu0 %v721
  %v965 = vpop.f32.mrb[0].mxu0
  %v966 = vadd.f32 %v777, %v965
  %v967 = vpop.f32.mrb[0].mxu0
  %v968 = vpop.f32.mrb[0].mxu0
  %v969 = vadd.f32 %v777, %v968
  %v970 = vpop.f32.mrb[0].mxu0
  %971 = vdwg.mxu0
  %972 = vmatprep.subr.bf16.mxu0 0
  %973 = vmatpush1.bf16.msra.mxu0 %v891
  %974 = vmatprep.subr.bf16.mxu0 0
  %975 = vmatpush1.bf16.msra.mxu0 %v892
  %976 = vmatprep.subr.bf16.mxu0 0
  %977 = vmatpush1.bf16.msra.mxu0 %v893
  %978 = vmatprep.subr.bf16.mxu0 0
  %979 = vmatpush1.bf16.msra.mxu0 %v894
  %980 = vmatprep.subr.bf16.mxu0 0
  %981 = vmatpush1.bf16.msra.mxu0 %v895
  %982 = vmatprep.subr.bf16.mxu0 0
  %983 = vmatpush1.bf16.msra.mxu0 %v896
  %984 = vmatprep.subr.bf16.mxu0 0
  %985 = vmatpush1.bf16.msra.mxu0 %v897
  %986 = vmatprep.subr.bf16.mxu0 0
  %987 = vmatpush1.bf16.msra.mxu0 %v898
  %988 = vmatprep.subr.bf16.mxu0 0
  %989 = vmatpush1.bf16.msra.mxu0 0
  %990 = vmatprep.subr.bf16.mxu0 0
  %991 = vmatpush1.bf16.msra.mxu0 0
  %992 = vmatprep.subr.bf16.mxu0 0
  %993 = vmatpush1.bf16.msra.mxu0 0
  %994 = vmatprep.subr.bf16.mxu0 0
  %995 = vmatpush1.bf16.msra.mxu0 0
  %996 = vmatprep.subr.bf16.mxu0 0
  %997 = vmatpush1.bf16.msra.mxu0 0
  %998 = vmatprep.subr.bf16.mxu0 0
  %999 = vmatpush1.bf16.msra.mxu0 0
  %1000 = vmatprep.subr.bf16.mxu0 0
  %1001 = vmatpush1.bf16.msra.mxu0 0
  %1002 = vmatprep.subr.bf16.mxu0 0
  %1003 = vmatpush1.bf16.msra.mxu0 0
  %1004 = vmatprep.mubr.bf16.mxu0 0
  %1005 = vmatmul.mubr.bf16.gmra.mrb[0].mxu0 %v720
  %v1006 = vpop.f32.mrb[0].mxu0
  %v1007 = vadd.f32 %v958, %v1006
  %v1008 = vpop.f32.mrb[0].mxu0
  %v1009 = vpop.f32.mrb[0].mxu0
  %v1010 = vadd.f32 %v961, %v1009
  %v1011 = vpop.f32.mrb[0].mxu0
  %1012 = vmatprep.mubr.bf16.mxu0 0
  %1013 = vmatmul.mubr.bf16.gmra.mrb[0].mxu0 %v723
  %v1014 = vpop.f32.mrb[0].mxu0
  %v1015 = vadd.f32 %v966, %v1014
  %v1016 = vpop.f32.mrb[0].mxu0
  %v1017 = vpop.f32.mrb[0].mxu0
  %v1018 = vadd.f32 %v969, %v1017
  %v1019 = vpop.f32.mrb[0].mxu0
  %1020 = vdwg.mxu0
  %v1021 = vadd.f32 %v1007, %v335
  %v1022 = vadd.f32 %v1010, %v336
  %v1023 = vadd.f32 %v1015, %v337
  %v1024 = vadd.f32 %v1018, %v338
  %v1029 = vrot.slane %v1021, 7
  %v1030 = vrot.slane %v1022, 7
  %v1031 = vsel %vm102, %v1029, %v1030
  %v1032 = vrot.slane %v1023, 7
  %v1033 = vsel %vm102, %v1030, %v1032
  %v1034 = vrot.slane %v1024, 7
  %v1035 = vsel %vm102, %v1032, %v1034
  %v1040 = vsel %vm102, %v1021, %v1029
  %v1041 = vrot.slane %v1021, 1
  %v1042 = vrot.slane %v1022, 1
  %v1043 = vsel %vm115, %v1041, %v1042
  %v1044 = vrot.slane %v1023, 1
  %v1045 = vsel %vm115, %v1042, %v1044
  %v1046 = vrot.slane %v1024, 1
  %v1047 = vsel %vm115, %v1044, %v1046
  %v1052 = vsel %vm115, %v1046, %v1024
  %v1053 = vsel %vm132, %v1043, %v1040
  %v1054 = vsel %vm133, %v1045, %v1031
  %v1055 = vsel %vm134, %v1047, %v1033
  %v1056 = vsel %vm135, %v1052, %v1035
  %v1057 = vsel %vm144, %v1040, %v1043
  %v1058 = vsel %vm145, %v1031, %v1045
  %v1059 = vsel %vm146, %v1033, %v1047
  %v1060 = vsel %vm147, %v1035, %v1052
  %v1061 = vpack.c.bf16 %v1054, %v1053
  %v1062 = vpack.c.bf16 %v1022, %v1021
  %v1063 = vpack.c.bf16 %v1058, %v1057
  %v1064 = vpack.c.bf16 %v1056, %v1055
  %v1065 = vpack.c.bf16 %v1024, %v1023
  %v1066 = vpack.c.bf16 %v1060, %v1059
  %v1067 = vld [vmem:[%s7] sm:$0xf]
  %v1068 = vld [vmem:[%s7 + $0x4] sm:$0xf]
  %v1069 = vld [vmem:[%s7 + $0x8] sm:$0xf]
  %v1070 = vld [vmem:[%s7 + $0xc] sm:$0xf]
  %v1071 = vld [vmem:[%s7 + $0x10] sm:$0xf]
  %v1072 = vld [vmem:[%s7 + $0x14] sm:$0xf]
  %v1073 = vld [vmem:[%s7 + $0x18] sm:$0xf]
  %v1074 = vld [vmem:[%s7 + $0x1c] sm:$0xf]
  %v1075 = vld [vmem:[%s7 + $0x20] sm:$0xf]
  %v1076 = vld [vmem:[%s7 + $0x24] sm:$0xf]
  %v1077 = vld [vmem:[%s7 + $0x28] sm:$0xf]
  %v1078 = vld [vmem:[%s7 + $0x2c] sm:$0xf]
  %v1079 = vld [vmem:[%s7 + $0x30] sm:$0xf]
  %v1080 = vld [vmem:[%s7 + $0x34] sm:$0xf]
  %v1081 = vld [vmem:[%s7 + $0x38] sm:$0xf]
  %v1082 = vld [vmem:[%s7 + $0x3c] sm:$0xf]
  %v1083 = vld [vmem:[%s7 + $0x40] sm:$0xf]
  %v1084 = vld [vmem:[%s7 + $0x44] sm:$0xf]
  %v1085 = vld [vmem:[%s7 + $0x48] sm:$0xf]
  %v1086 = vld [vmem:[%s7 + $0x4c] sm:$0xf]
  %v1087 = vld [vmem:[%s7 + $0x50] sm:$0xf]
  %v1088 = vld [vmem:[%s7 + $0x54] sm:$0xf]
  %v1089 = vld [vmem:[%s7 + $0x58] sm:$0xf]
  %v1090 = vld [vmem:[%s7 + $0x5c] sm:$0xf]
  %v1091 = vld [vmem:[%s7 + $0x60] sm:$0xf]
  %v1092 = vld [vmem:[%s7 + $0x64] sm:$0xf]
  %v1093 = vld [vmem:[%s7 + $0x68] sm:$0xf]
  %v1094 = vld [vmem:[%s7 + $0x6c] sm:$0xf]
  %v1095 = vld [vmem:[%s7 + $0x70] sm:$0xf]
  %v1096 = vld [vmem:[%s7 + $0x74] sm:$0xf]
  %v1097 = vld [vmem:[%s7 + $0x78] sm:$0xf]
  %v1098 = vld [vmem:[%s7 + $0x7c] sm:$0xf]
  %v1099 = vld [vmem:[%s7 + $0x80] sm:$0xf]
  %v1100 = vld [vmem:[%s7 + $0x84] sm:$0xf]
  %v1101 = vld [vmem:[%s7 + $0x88] sm:$0xf]
  %v1102 = vld [vmem:[%s7 + $0x8c] sm:$0xf]
  %v1103 = vld [vmem:[%s7 + $0x90] sm:$0xf]
  %v1104 = vld [vmem:[%s7 + $0x94] sm:$0xf]
  %v1105 = vld [vmem:[%s7 + $0x98] sm:$0xf]
  %v1106 = vld [vmem:[%s7 + $0x9c] sm:$0xf]
  %v1107 = vld [vmem:[%s7 + $0xa0] sm:$0xf]
  %v1108 = vld [vmem:[%s7 + $0xa4] sm:$0xf]
  %v1109 = vld [vmem:[%s7 + $0xa8] sm:$0xf]
  %v1110 = vld [vmem:[%s7 + $0xac] sm:$0xf]
  %v1111 = vld [vmem:[%s7 + $0xb0] sm:$0xf]
  %v1112 = vld [vmem:[%s7 + $0xb4] sm:$0xf]
  %v1113 = vld [vmem:[%s7 + $0xb8] sm:$0xf]
  %v1114 = vld [vmem:[%s7 + $0xbc] sm:$0xf]
  %v1115 = vld [vmem:[%s8] sm:$0x1]
  %v1117 = vlaneseq
  %v1118 = vshrl.u32 %v1117, 7
  %v1119 = vsub.s32 0, %v1118
  %v1120 = vrot.slane %v1115, %v1119
  %v1170 = vunpack.c.l.b16 %v1067
  %v1171 = vunpack.c.l.b16 %v1068
  %v1172 = vunpack.c.l.b16 %v1069
  %v1173 = vunpack.c.l.b16 %v1070
  %v1174 = vunpack.c.l.b16 %v1071
  %v1175 = vunpack.c.l.b16 %v1072
  %v1176 = vunpack.c.l.b16 %v1073
  %v1177 = vunpack.c.l.b16 %v1074
  %v1178 = vunpack.c.l.b16 %v1075
  %v1179 = vunpack.c.l.b16 %v1076
  %v1180 = vunpack.c.l.b16 %v1077
  %v1181 = vunpack.c.l.b16 %v1078
  %v1182 = vunpack.c.l.b16 %v1079
  %v1183 = vunpack.c.l.b16 %v1080
  %v1184 = vunpack.c.l.b16 %v1081
  %v1185 = vunpack.c.l.b16 %v1082
  %v1186 = vunpack.c.l.b16 %v1083
  %v1187 = vunpack.c.l.b16 %v1084
  %v1188 = vunpack.c.l.b16 %v1085
  %v1189 = vunpack.c.l.b16 %v1086
  %v1190 = vunpack.c.l.b16 %v1087
  %v1191 = vunpack.c.l.b16 %v1088
  %v1192 = vunpack.c.l.b16 %v1089
  %v1193 = vunpack.c.l.b16 %v1090
  %v1194 = vunpack.c.l.b16 %v1091
  %v1195 = vunpack.c.l.b16 %v1092
  %v1196 = vunpack.c.l.b16 %v1093
  %v1197 = vunpack.c.l.b16 %v1094
  %v1198 = vunpack.c.l.b16 %v1095
  %v1199 = vunpack.c.l.b16 %v1096
  %v1200 = vunpack.c.l.b16 %v1097
  %v1201 = vunpack.c.l.b16 %v1098
  %v1202 = vunpack.c.l.b16 %v1099
  %v1203 = vunpack.c.l.b16 %v1100
  %v1204 = vunpack.c.l.b16 %v1101
  %v1205 = vunpack.c.l.b16 %v1102
  %v1206 = vunpack.c.l.b16 %v1103
  %v1207 = vunpack.c.l.b16 %v1104
  %v1208 = vunpack.c.l.b16 %v1105
  %v1209 = vunpack.c.l.b16 %v1106
  %v1210 = vunpack.c.l.b16 %v1107
  %v1211 = vunpack.c.l.b16 %v1108
  %v1212 = vunpack.c.l.b16 %v1109
  %v1213 = vunpack.c.l.b16 %v1110
  %v1214 = vunpack.c.l.b16 %v1111
  %v1215 = vunpack.c.l.b16 %v1112
  %v1216 = vunpack.c.l.b16 %v1113
  %v1217 = vunpack.c.l.b16 %v1114
  %v1218 = vpack.c.b16 %v1171, %v1170
  %v1219 = vpack.c.b16 %v1173, %v1172
  %v1220 = vpack.c.b16 %v1175, %v1174
  %v1221 = vpack.c.b16 %v1177, %v1176
  %v1222 = vpack.c.b16 %v1179, %v1178
  %v1223 = vpack.c.b16 %v1181, %v1180
  %v1224 = vpack.c.b16 %v1183, %v1182
  %v1225 = vpack.c.b16 %v1185, %v1184
  %v1226 = vpack.c.b16 %v1187, %v1186
  %v1227 = vpack.c.b16 %v1189, %v1188
  %v1228 = vpack.c.b16 %v1191, %v1190
  %v1229 = vpack.c.b16 %v1193, %v1192
  %v1230 = vpack.c.b16 %v1195, %v1194
  %v1231 = vpack.c.b16 %v1197, %v1196
  %v1232 = vpack.c.b16 %v1199, %v1198
  %v1233 = vpack.c.b16 %v1201, %v1200
  %v1234 = vpack.c.b16 %v1203, %v1202
  %v1235 = vpack.c.b16 %v1205, %v1204
  %v1236 = vpack.c.b16 %v1207, %v1206
  %v1237 = vpack.c.b16 %v1209, %v1208
  %v1238 = vpack.c.b16 %v1211, %v1210
  %v1239 = vpack.c.b16 %v1213, %v1212
  %v1240 = vpack.c.b16 %v1215, %v1214
  %v1241 = vpack.c.b16 %v1217, %v1216
  %1266 = vmatprep.subr.bf16.mxu0 0
  %1267 = vmatpush1.bf16.msra.mxu0 %v1218
  %1268 = vmatprep.subr.bf16.mxu0 0
  %1269 = vmatpush1.bf16.msra.mxu0 %v1219
  %1270 = vmatprep.subr.bf16.mxu0 0
  %1271 = vmatpush1.bf16.msra.mxu0 %v1220
  %1272 = vmatprep.subr.bf16.mxu0 0
  %1273 = vmatpush1.bf16.msra.mxu0 %v1221
  %1274 = vmatprep.subr.bf16.mxu0 0
  %1275 = vmatpush1.bf16.msra.mxu0 %v1222
  %1276 = vmatprep.subr.bf16.mxu0 0
  %1277 = vmatpush1.bf16.msra.mxu0 %v1223
  %1278 = vmatprep.subr.bf16.mxu0 0
  %1279 = vmatpush1.bf16.msra.mxu0 %v1224
  %1280 = vmatprep.subr.bf16.mxu0 0
  %1281 = vmatpush1.bf16.msra.mxu0 %v1225
  %1282 = vmatprep.subr.bf16.mxu0 0
  %1283 = vmatpush1.bf16.msra.mxu0 %v1226
  %1284 = vmatprep.subr.bf16.mxu0 0
  %1285 = vmatpush1.bf16.msra.mxu0 %v1227
  %1286 = vmatprep.subr.bf16.mxu0 0
  %1287 = vmatpush1.bf16.msra.mxu0 %v1228
  %1288 = vmatprep.subr.bf16.mxu0 0
  %1289 = vmatpush1.bf16.msra.mxu0 %v1229
  %1290 = vmatprep.subr.bf16.mxu0 0
  %1291 = vmatpush1.bf16.msra.mxu0 %v1230
  %1292 = vmatprep.subr.bf16.mxu0 0
  %1293 = vmatpush1.bf16.msra.mxu0 %v1231
  %1294 = vmatprep.subr.bf16.mxu0 0
  %1295 = vmatpush1.bf16.msra.mxu0 %v1232
  %1296 = vmatprep.subr.bf16.mxu0 0
  %1297 = vmatpush1.bf16.msra.mxu0 %v1233
  %1298 = vmatprep.mubr.bf16.mxu0 %v1062
  %1299 = vmatmul.mubr.bf16.gmra.mrb[0].mxu0 %v1061
  %v1300 = vpop.f32.mrb[0].mxu0
  %v1301 = vadd.f32 %v1120, %v1300
  %v1302 = vpop.f32.mrb[0].mxu0
  %v1303 = vpop.f32.mrb[0].mxu0
  %v1304 = vadd.f32 %v1120, %v1303
  %v1305 = vpop.f32.mrb[0].mxu0
  %1306 = vmatprep.mubr.bf16.mxu0 %v1065
  %1307 = vmatmul.mubr.bf16.gmra.mrb[0].mxu0 %v1064
  %v1308 = vpop.f32.mrb[0].mxu0
  %v1309 = vadd.f32 %v1120, %v1308
  %v1310 = vpop.f32.mrb[0].mxu0
  %v1311 = vpop.f32.mrb[0].mxu0
  %v1312 = vadd.f32 %v1120, %v1311
  %v1313 = vpop.f32.mrb[0].mxu0
  %1314 = vdwg.mxu0
  %1315 = vmatprep.subr.bf16.mxu0 0
  %1316 = vmatpush1.bf16.msra.mxu0 %v1234
  %1317 = vmatprep.subr.bf16.mxu0 0
  %1318 = vmatpush1.bf16.msra.mxu0 %v1235
  %1319 = vmatprep.subr.bf16.mxu0 0
  %1320 = vmatpush1.bf16.msra.mxu0 %v1236
  %1321 = vmatprep.subr.bf16.mxu0 0
  %1322 = vmatpush1.bf16.msra.mxu0 %v1237
  %1323 = vmatprep.subr.bf16.mxu0 0
  %1324 = vmatpush1.bf16.msra.mxu0 %v1238
  %1325 = vmatprep.subr.bf16.mxu0 0
  %1326 = vmatpush1.bf16.msra.mxu0 %v1239
  %1327 = vmatprep.subr.bf16.mxu0 0
  %1328 = vmatpush1.bf16.msra.mxu0 %v1240
  %1329 = vmatprep.subr.bf16.mxu0 0
  %1330 = vmatpush1.bf16.msra.mxu0 %v1241
  %1331 = vmatprep.subr.bf16.mxu0 0
  %1332 = vmatpush1.bf16.msra.mxu0 0
  %1333 = vmatprep.subr.bf16.mxu0 0
  %1334 = vmatpush1.bf16.msra.mxu0 0
  %1335 = vmatprep.subr.bf16.mxu0 0
  %1336 = vmatpush1.bf16.msra.mxu0 0
  %1337 = vmatprep.subr.bf16.mxu0 0
  %1338 = vmatpush1.bf16.msra.mxu0 0
  %1339 = vmatprep.subr.bf16.mxu0 0
  %1340 = vmatpush1.bf16.msra.mxu0 0
  %1341 = vmatprep.subr.bf16.mxu0 0
  %1342 = vmatpush1.bf16.msra.mxu0 0
  %1343 = vmatprep.subr.bf16.mxu0 0
  %1344 = vmatpush1.bf16.msra.mxu0 0
  %1345 = vmatprep.subr.bf16.mxu0 0
  %1346 = vmatpush1.bf16.msra.mxu0 0
  %1347 = vmatprep.mubr.bf16.mxu0 0
  %1348 = vmatmul.mubr.bf16.gmra.mrb[0].mxu0 %v1063
  %v1349 = vpop.f32.mrb[0].mxu0
  %v1350 = vadd.f32 %v1301, %v1349
  %v1351 = vpop.f32.mrb[0].mxu0
  %v1352 = vpop.f32.mrb[0].mxu0
  %v1353 = vadd.f32 %v1304, %v1352
  %v1354 = vpop.f32.mrb[0].mxu0
  %1355 = vmatprep.mubr.bf16.mxu0 0
  %1356 = vmatmul.mubr.bf16.gmra.mrb[0].mxu0 %v1066
  %v1357 = vpop.f32.mrb[0].mxu0
  %v1358 = vadd.f32 %v1309, %v1357
  %v1359 = vpop.f32.mrb[0].mxu0
  %v1360 = vpop.f32.mrb[0].mxu0
  %v1361 = vadd.f32 %v1312, %v1360
  %v1362 = vpop.f32.mrb[0].mxu0
  %1363 = vdwg.mxu0
  %1364 = vst.msk [vmem:[%s9] sm:$0xff] %vm164, %v1350
  %1365 = vst.msk [vmem:[%s9 + $0x8] sm:$0xff] %vm164, %v1353
  %1366 = vst.msk [vmem:[%s9 + $0x10] sm:$0xff] %vm164, %v1358
  %1367 = vst.msk [vmem:[%s9 + $0x18] sm:$0xff] %vm164, %v1361
  // Predicated region
  $region38: #{post_correlation_block.1} parent=0 // pred_check
    _
  $region39: #{post_correlation_block.1} parent=0 // pred_check_branch
    %1369 = sbr.rel (0) target = $region41
  $region40: #{post_correlation_block.1} parent=0 // pred_region
    _
  $region41: #{post_correlation_block.1} parent=0 // pred_fallthru
    _
  // Predicated region
  $region42: #{post_correlation_block.1} parent=0 // pred_check
    _
  $region43: #{post_correlation_block.1} parent=0 // pred_check_branch
    %1371 = sbr.rel (0) target = $region45
  $region44: #{post_correlation_block.1} parent=0 // pred_region
    _
  $region45: #{post_correlation_block.1} parent=0 // pred_fallthru
    _

</llo_original>
